<compile_context>
chip_gen: v5e
topology: v5e:2x2
jax: 0.10.0
libtpu: 0.0.40
codegen_flags: <defaults>
</compile_context>

<pallas_src>
import functools

import jax
import jax.numpy as jnp
from jax.experimental import pallas as pl
from jax.experimental.pallas import tpu as pltpu


def _round_up(v: int, m: int) -> int:
    return -(-v // m) * m


def _cdiv(a: int, b: int) -> int:
    return -(-a // b)


_NATIVE_SUBLANES = {4: 8, 2: 16, 1: 32}   # itemsize -> packed sublane count


def _pick_seq_tile(S: int, F: int, itemsize: int, halo: int,
                   budget_bytes: int, max_rows: int, batch: int):
    """Pick seq-tile rows (multiple of `halo`) sized against the real working
    set: 2x double-buffered input + output blocks, the f32 accumulator and
    ~2 f32 elementwise temporaries."""
    per_row = F * (4 * itemsize + 12)
    rows = max(budget_bytes // max(per_row, 1), halo)
    rows = min(rows, max_rows, _round_up(S, halo))
    ts = max((rows // halo) * halo, halo)
    nt = _cdiv(S, ts)
    # v7x has 2 TensorCores: try to keep the parallel grid extent even.
    if (batch * nt) % 2 == 1 and nt < _cdiv(S, halo):
        for extra in (1, 2, 3):
            ts2 = max(_round_up(_cdiv(S, nt + extra), halo), halo)
            nt2 = _cdiv(S, ts2)
            if (batch * nt2) % 2 == 0:
                return ts2, nt2
    return ts, nt


def _scale_kernel(w_ref, x_ref, o_ref):
    """kernel_size == 1 degenerate case: pure per-element scale."""
    o_ref[...] = (w_ref[0] * x_ref[...]).astype(o_ref.dtype)


def _smoothing_kernel(w_ref, halo_ref, x_ref, o_ref, *scratch,
                      kernel_size: int, halo_rows: int):
    """One (1, TS, F) sequence tile per grid step.

    w_ref    : SMEM (K,) f32     template weights (w[K-1] hits the current row)
    halo_ref : VMEM (1, H, F)    the H rows immediately preceding this tile
    x_ref    : VMEM (1, TS, F)   current tile (native dtype)
    o_ref    : VMEM (1, TS, F)   output tile
    scratch  : optional f32 VMEM (1, TS, F) accumulator (only when x is not f32)
    """
    K = kernel_size
    Km1 = K - 1
    TS, F = x_ref.shape[1], x_ref.shape[2]
    acc_ref = scratch[0] if scratch else o_ref

    wv = [w_ref[j] for j in range(K)]          # hoist SMEM scalar reads once

    # Aligned tap (j = K-1 multiplies the current row).  Promotion to f32
    # happens inside the multiply -- no materialized f32 copy of the tile.
    acc_ref[...] = wv[Km1] * x_ref[...]

    # Strictly-causal taps: j = K-1-d looks back d rows.  The bulk (output rows
    # [d, TS)) reads the current tile shifted by d; the first d rows are patched
    # from the halo / replicated left edge below.  No concatenated "padded"
    # temporary is ever built.
    for d in range(1, K):
        acc_ref[0, d:, :] = acc_ref[0, d:, :] + wv[Km1 - d] * x_ref[0, :TS - d, :]

    if Km1 > 0:
        first_tile = pl.program_id(1) == 0
        edge = jnp.where(
            first_tile,
            jnp.broadcast_to(x_ref[0, 0:1, :], (Km1, F)),   # replicate row 0
            halo_ref[0, halo_rows - Km1:, :],               # previous-tile tail
        )                                                    # (K-1, F) -- tiny
        for d in range(1, K):
            acc_ref[0, :d, :] = acc_ref[0, :d, :] + wv[Km1 - d] * edge[Km1 - d:, :]

    if scratch:
        o_ref[...] = acc_ref[...].astype(o_ref.dtype)


def adapt_smoothing_forward(x: jax.Array, weight: jax.Array, kernel_size: int, *,
                            vmem_budget_bytes: int = 8 << 20,
                            max_tile_rows: int = 4096) -> jax.Array:
    """x: (B, S, F); weight: nn.Linear(K, 1, bias=False).weight, shape (1, K)
    (or Conv1d(K, 1, 1) weight (1, K, 1) -- same math).  Returns (B, S, F)."""
    B, S, F = x.shape
    K = int(kernel_size)
    w = jnp.asarray(weight, jnp.float32).reshape(-1)
    if w.shape[0] != K:
        raise ValueError(f"weight has {w.shape[0]} taps, expected {K}")

    itemsize = jnp.dtype(x.dtype).itemsize
    sublanes = _NATIVE_SUBLANES.get(itemsize, 8)
    halo = _round_up(max(K - 1, 1), sublanes)
    ts, nt = _pick_seq_tile(S, F, itemsize, halo, vmem_budget_bytes, max_tile_rows, B)
    grid = (B, nt)

    w_spec = pl.BlockSpec(memory_space=pltpu.MemorySpace.SMEM)
    x_spec = pl.BlockSpec((1, ts, F), lambda b, t: (b, t, 0))
    o_spec = pl.BlockSpec((1, ts, F), lambda b, t: (b, t, 0))
    out_shape = jax.ShapeDtypeStruct((B, S, F), x.dtype)
    compiler_params = pltpu.CompilerParams(
        dimension_semantics=("parallel", "parallel"),
        vmem_limit_bytes=32 * 1024 * 1024)

    if K == 1:
        return pl.pallas_call(
            _scale_kernel,
            out_shape=out_shape,
            grid=grid,
            in_specs=[w_spec, x_spec],
            out_specs=o_spec,
            compiler_params=compiler_params,
        )(w, x)

    blocks_per_tile = ts // halo
    halo_spec = pl.BlockSpec(
        (1, halo, F),
        lambda b, t: (b, jnp.maximum(t * blocks_per_tile - 1, 0), 0))

    needs_acc = x.dtype != jnp.float32
    scratch_shapes = [pltpu.VMEM((1, ts, F), jnp.float32)] if needs_acc else []
    kernel = functools.partial(_smoothing_kernel, kernel_size=K, halo_rows=halo)

    return pl.pallas_call(
        kernel,
        out_shape=out_shape,
        grid=grid,
        in_specs=[w_spec, halo_spec, x_spec],
        out_specs=o_spec,
        scratch_shapes=scratch_shapes,
        compiler_params=compiler_params,
    )(w, x, x)


def _reference_forward(x, weight, kernel_size):
    """Pure-JAX reference mirroring the torch unfold + Linear path (f32 accum)."""
    B, S, F = x.shape
    w = jnp.asarray(weight, jnp.float32).reshape(-1)
    if kernel_size > 1:
        front = jnp.repeat(x[:, 0:1, :], kernel_size - 1, axis=1)
        xpad = jnp.concatenate([front, x], axis=1)
    else:
        xpad = x
    out = jnp.zeros((B, S, F), jnp.float32)
    for j in range(kernel_size):
        out = out + w[j] * xpad[:, j:j + S, :].astype(jnp.float32)
    return out.astype(x.dtype)


if __name__ == "__main__":
    key = jax.random.PRNGKey(0)
    k1, k2, k3, k4, k5, k6 = jax.random.split(key, 6)

    # --- 1. Module-sized check (B=2, S=8, F=32), single tile + replicated edge.
    K = 3
    B, S, F = 2, 8, 32
    x = jax.random.normal(k1, (B, S, F), dtype=jnp.float32)

    # Module's own init: weight filled with 0.0 -> output must be exactly zero.
    w_zero = jnp.zeros((1, K), dtype=jnp.float32)
    out_zero = jax.block_until_ready(adapt_smoothing_forward(x, w_zero, K))
    assert out_zero.shape == (B, S, F)
    assert bool(jnp.all(out_zero == 0.0))

    # Non-zero template vs. pure-JAX reference.
    w_rnd = jax.random.normal(k2, (1, K), dtype=jnp.float32)
    out = jax.block_until_ready(adapt_smoothing_forward(x, w_rnd, K))
    ref = _reference_forward(x, w_rnd, K)
    assert jnp.allclose(out, ref, atol=1e-4, rtol=1e-4)

    # --- 2. Multi-tile + halo + ragged last tile (f32, S=50 not divisible by 16).
    B2, S2, F2, K2 = 1, 50, 256, 4
    x2 = jax.random.normal(k3, (B2, S2, F2), dtype=jnp.float32)
    w2 = jax.random.normal(k4, (1, K2), dtype=jnp.float32)
    out2 = jax.block_until_ready(
        adapt_smoothing_forward(x2, w2, K2, max_tile_rows=16))
    ref2 = _reference_forward(x2, w2, K2)
    assert jnp.allclose(out2, ref2, atol=1e-4, rtol=1e-4)

    # --- 3. bf16 input: exercises the f32 accumulator scratch + 16-row halo.
    B3, S3, F3, K3_ = 2, 64, 128, 3
    x3 = jax.random.normal(k5, (B3, S3, F3), dtype=jnp.float32).astype(jnp.bfloat16)
    w3 = jax.random.normal(k6, (1, K3_), dtype=jnp.float32)
    out3 = jax.block_until_ready(
        adapt_smoothing_forward(x3, w3, K3_, max_tile_rows=32))
    ref3 = _reference_forward(x3, w3, K3_)
    assert jnp.allclose(out3.astype(jnp.float32), ref3.astype(jnp.float32),
                        atol=3e-2, rtol=3e-2)

    # --- 4. Degenerate kernel_size = 1 (pure scale path).
    out4 = jax.block_until_ready(adapt_smoothing_forward(x, w_rnd[:, :1], 1))
    assert jnp.allclose(out4, w_rnd[0, 0] * x, atol=1e-5, rtol=1e-5)

    print("KERNEL_OK")
</pallas_src>

<mosaic_0001>
module attributes {stable_mosaic.version = 11 : i64} {
  func.func @_smoothing_kernel(%arg0: i32, %arg1: i32, %arg2: memref<3xf32, #tpu.memory_space<smem>>, %arg3: memref<1x8x32xf32, #tpu.memory_space<vmem>>, %arg4: memref<1x8x32xf32, #tpu.memory_space<vmem>>, %arg5: memref<1x8x32xf32, #tpu.memory_space<vmem>>) attributes {dimension_semantics = [#tpu.dimension_semantics<parallel>, #tpu.dimension_semantics<parallel>], iteration_bounds = array<i64: 2, 1>, scalar_prefetch = 0 : i64, scratch_operands = 0 : i64, tpu.core_type = #tpu.core_type<tc>, window_params = [{transform_indices = @transform_0, window_bounds = array<i64: 3>}, {transform_indices = @transform_1, window_bounds = array<i64: 1, 8, 32>}, {transform_indices = @transform_2, window_bounds = array<i64: 1, 8, 32>}, {transform_indices = @transform_3, window_bounds = array<i64: 1, 8, 32>}]} {
    %c0 = arith.constant 0 : index
    %0 = memref.load %arg2[%c0] : memref<3xf32, #tpu.memory_space<smem>>
    %c1 = arith.constant 1 : index
    %1 = memref.load %arg2[%c1] : memref<3xf32, #tpu.memory_space<smem>>
    %c2 = arith.constant 2 : index
    %2 = memref.load %arg2[%c2] : memref<3xf32, #tpu.memory_space<smem>>
    %c0_0 = arith.constant 0 : index
    %c0_1 = arith.constant 0 : index
    %c0_2 = arith.constant 0 : index
    %3 = vector.load %arg4[%c0_0, %c0_1, %c0_2] : memref<1x8x32xf32, #tpu.memory_space<vmem>>, vector<1x8x32xf32>
    %4 = vector.broadcast %2 : f32 to vector<1x8x32xf32>
    %5 = arith.mulf %4, %3 : vector<1x8x32xf32>
    %c0_3 = arith.constant 0 : index
    %c0_4 = arith.constant 0 : index
    %c0_5 = arith.constant 0 : index
    %6 = vector.load %arg5[%c0_3, %c0_4, %c0_5] : memref<1x8x32xf32, #tpu.memory_space<vmem>>, vector<1x8x32xf32>
    tpu.vector_store %arg5[%c0_3, %c0_4, %c0_5], %5 {strides = array<i32>} : memref<1x8x32xf32, #tpu.memory_space<vmem>>, vector<1x8x32xf32>,
    %c0_6 = arith.constant 0 : index
    %c1_7 = arith.constant 1 : index
    %c0_8 = arith.constant 0 : index
    %7 = vector.load %arg5[%c0_6, %c1_7, %c0_8] : memref<1x8x32xf32, #tpu.memory_space<vmem>>, vector<1x7x32xf32>
    %8 = vector.shape_cast %7 : vector<1x7x32xf32> to vector<7x32xf32>
    %c0_9 = arith.constant 0 : index
    %c0_10 = arith.constant 0 : index
    %c0_11 = arith.constant 0 : index
    %9 = vector.load %arg4[%c0_9, %c0_10, %c0_11] : memref<1x8x32xf32, #tpu.memory_space<vmem>>, vector<1x7x32xf32>
    %10 = vector.shape_cast %9 : vector<1x7x32xf32> to vector<7x32xf32>
    %11 = vector.broadcast %1 : f32 to vector<7x32xf32>
    %12 = arith.mulf %11, %10 : vector<7x32xf32>
    %13 = arith.addf %8, %12 : vector<7x32xf32>
    %c0_12 = arith.constant 0 : index
    %c1_13 = arith.constant 1 : index
    %c0_14 = arith.constant 0 : index
    %14 = vector.load %arg5[%c0_12, %c1_13, %c0_14] : memref<1x8x32xf32, #tpu.memory_space<vmem>>, vector<1x7x32xf32>
    %15 = vector.shape_cast %14 : vector<1x7x32xf32> to vector<7x32xf32>
    %16 = vector.shape_cast %13 : vector<7x32xf32> to vector<1x7x32xf32>
    tpu.vector_store %arg5[%c0_12, %c1_13, %c0_14], %16 {strides = array<i32>} : memref<1x8x32xf32, #tpu.memory_space<vmem>>, vector<1x7x32xf32>,
    %c0_15 = arith.constant 0 : index
    %c2_16 = arith.constant 2 : index
    %c0_17 = arith.constant 0 : index
    %17 = vector.load %arg5[%c0_15, %c2_16, %c0_17] : memref<1x8x32xf32, #tpu.memory_space<vmem>>, vector<1x6x32xf32>
    %18 = vector.shape_cast %17 : vector<1x6x32xf32> to vector<6x32xf32>
    %c0_18 = arith.constant 0 : index
    %c0_19 = arith.constant 0 : index
    %c0_20 = arith.constant 0 : index
    %19 = vector.load %arg4[%c0_18, %c0_19, %c0_20] : memref<1x8x32xf32, #tpu.memory_space<vmem>>, vector<1x6x32xf32>
    %20 = vector.shape_cast %19 : vector<1x6x32xf32> to vector<6x32xf32>
    %21 = vector.broadcast %0 : f32 to vector<6x32xf32>
    %22 = arith.mulf %21, %20 : vector<6x32xf32>
    %23 = arith.addf %18, %22 : vector<6x32xf32>
    %c0_21 = arith.constant 0 : index
    %c2_22 = arith.constant 2 : index
    %c0_23 = arith.constant 0 : index
    %24 = vector.load %arg5[%c0_21, %c2_22, %c0_23] : memref<1x8x32xf32, #tpu.memory_space<vmem>>, vector<1x6x32xf32>
    %25 = vector.shape_cast %24 : vector<1x6x32xf32> to vector<6x32xf32>
    %26 = vector.shape_cast %23 : vector<6x32xf32> to vector<1x6x32xf32>
    tpu.vector_store %arg5[%c0_21, %c2_22, %c0_23], %26 {strides = array<i32>} : memref<1x8x32xf32, #tpu.memory_space<vmem>>, vector<1x6x32xf32>,
    %c0_i32 = arith.constant 0 : i32
    %27 = arith.cmpi eq, %arg1, %c0_i32 : i32
    %c0_24 = arith.constant 0 : index
    %c0_25 = arith.constant 0 : index
    %c0_26 = arith.constant 0 : index
    %28 = vector.load %arg4[%c0_24, %c0_25, %c0_26] : memref<1x8x32xf32, #tpu.memory_space<vmem>>, vector<1x1x32xf32>
    %29 = vector.shape_cast %28 : vector<1x1x32xf32> to vector<1x32xf32>
    %30 = vector.shape_cast %29 : vector<1x32xf32> to vector<1x32xf32>
    %31 = vector.broadcast %30 : vector<1x32xf32> to vector<2x32xf32>
    %c0_27 = arith.constant 0 : index
    %c6 = arith.constant 6 : index
    %c0_28 = arith.constant 0 : index
    %32 = vector.load %arg3[%c0_27, %c6, %c0_28] : memref<1x8x32xf32, #tpu.memory_space<vmem>>, vector<1x2x32xf32>
    %33 = vector.shape_cast %32 : vector<1x2x32xf32> to vector<2x32xf32>
    %34 = arith.select %27, %31, %33 : vector<2x32xf32>
    %c0_29 = arith.constant 0 : index
    %c0_30 = arith.constant 0 : index
    %c0_31 = arith.constant 0 : index
    %35 = vector.load %arg5[%c0_29, %c0_30, %c0_31] : memref<1x8x32xf32, #tpu.memory_space<vmem>>, vector<1x1x32xf32>
    %36 = vector.shape_cast %35 : vector<1x1x32xf32> to vector<1x32xf32>
    %37 = vector.extract_strided_slice %34 {offsets = [1, 0], sizes = [1, 32], strides = [1, 1]} : vector<2x32xf32> to vector<1x32xf32>
    %38 = vector.broadcast %1 : f32 to vector<1x32xf32>
    %39 = arith.mulf %38, %37 : vector<1x32xf32>
    %40 = arith.addf %36, %39 : vector<1x32xf32>
    %c0_32 = arith.constant 0 : index
    %c0_33 = arith.constant 0 : index
    %c0_34 = arith.constant 0 : index
    %41 = vector.load %arg5[%c0_32, %c0_33, %c0_34] : memref<1x8x32xf32, #tpu.memory_space<vmem>>, vector<1x1x32xf32>
    %42 = vector.shape_cast %41 : vector<1x1x32xf32> to vector<1x32xf32>
    %43 = vector.shape_cast %40 : vector<1x32xf32> to vector<1x1x32xf32>
    tpu.vector_store %arg5[%c0_32, %c0_33, %c0_34], %43 {strides = array<i32>} : memref<1x8x32xf32, #tpu.memory_space<vmem>>, vector<1x1x32xf32>,
    %c0_35 = arith.constant 0 : index
    %c0_36 = arith.constant 0 : index
    %c0_37 = arith.constant 0 : index
    %44 = vector.load %arg5[%c0_35, %c0_36, %c0_37] : memref<1x8x32xf32, #tpu.memory_space<vmem>>, vector<1x2x32xf32>
    %45 = vector.shape_cast %44 : vector<1x2x32xf32> to vector<2x32xf32>
    %46 = vector.broadcast %0 : f32 to vector<2x32xf32>
    %47 = arith.mulf %46, %34 : vector<2x32xf32>
    %48 = arith.addf %45, %47 : vector<2x32xf32>
    %c0_38 = arith.constant 0 : index
    %c0_39 = arith.constant 0 : index
    %c0_40 = arith.constant 0 : index
    %49 = vector.load %arg5[%c0_38, %c0_39, %c0_40] : memref<1x8x32xf32, #tpu.memory_space<vmem>>, vector<1x2x32xf32>
    %50 = vector.shape_cast %49 : vector<1x2x32xf32> to vector<2x32xf32>
    %51 = vector.shape_cast %48 : vector<2x32xf32> to vector<1x2x32xf32>
    tpu.vector_store %arg5[%c0_38, %c0_39, %c0_40], %51 {strides = array<i32>} : memref<1x8x32xf32, #tpu.memory_space<vmem>>, vector<1x2x32xf32>,
    return
  }
  func.func @transform_0(%arg0: i32, %arg1: i32) -> i32 {
    %c0_i32 = arith.constant 0 : i32
    %c0_i32_0 = arith.constant 0 : i32
    return %c0_i32 : i32
  }
  func.func @transform_1(%arg0: i32, %arg1: i32) -> (i32, i32, i32) {
    %c1_i32 = arith.constant 1 : i32
    %0 = arith.muli %arg1, %c1_i32 : i32
    %c1_i32_0 = arith.constant 1 : i32
    %1 = arith.subi %0, %c1_i32_0 : i32
    %c0_i32 = arith.constant 0 : i32
    %2 = arith.maxsi %1, %c0_i32 : i32
    %c0_i32_1 = arith.constant 0 : i32
    %c0_i32_2 = arith.constant 0 : i32
    return %arg0, %2, %c0_i32_1 : i32, i32, i32
  }
  func.func @transform_2(%arg0: i32, %arg1: i32) -> (i32, i32, i32) {
    %c0_i32 = arith.constant 0 : i32
    %c0_i32_0 = arith.constant 0 : i32
    return %arg0, %arg1, %c0_i32 : i32, i32, i32
  }
  func.func @transform_3(%arg0: i32, %arg1: i32) -> (i32, i32, i32) {
    %c0_i32 = arith.constant 0 : i32
    %c0_i32_0 = arith.constant 0 : i32
    return %arg0, %arg1, %c0_i32 : i32, i32, i32
  }
}

</mosaic_0001>

<llo_original>
// kernel: tpu_custom_call.1
$region0: #{tpu_custom_call.1}
  #allocation0 [shape = 'u32[]', space=smem, size = 0x4, offset = 0x4, fixed_abs, tag = 'smem constant byte address 0x4 - core index']
  #allocation1 [shape = 'u32[72,128]{1,0:T(1,128)}', space=vmem, size = 0x9000, scoped, tag = 'internal scratch']
  %s0 = inlined_call_operand.hbm [shape: f32[3], index: 0, kind: input, shape index: {}]
  %s1 = inlined_call_operand.hbm [shape: f32[2,8,32], index: 1, kind: input, shape index: {}]
  %s2 = inlined_call_operand.hbm [shape: f32[2,8,32], index: 2, kind: input, shape index: {}]
  %s3 = inlined_call_operand.hbm [shape: f32[2,8,32], index: 3, kind: output, shape index: {}]
  %s4 = sld [smem:[#allocation0]]
  $region57: #{tpu_custom_call.1} parent=0
    _
  %s6 = ssub.s32 1, %s4
  %s7 = scalar_select 0, %s6, %s4
  $region1: #{tpu_custom_call.1} parent=0
    #allocation2 [shape = 'u8[512]{0}', space=smem, size = 0x200, scoped, tag = 'input window, operand 0, single buffered']
    #allocation3 [shape = 's32[2]{0}', space=sflag, size = 0x8, scoped, tag = 'scoped memory for tpu_custom_call.1']
    #allocation4 [shape = 's32[2]{0}', space=sflag, size = 0x8, scoped, tag = 'scoped memory for tpu_custom_call.1']
    #allocation5 [shape = 's32[2]{0}', space=sflag, size = 0x8, scoped, tag = 'scoped memory for tpu_custom_call.1']
    #allocation6 [shape = 'u8[8192]{0}', space=vmem, size = 0x2000, scoped, tag = 'input window, operand 1']
    #allocation7 [shape = 'u8[8192]{0}', space=vmem, size = 0x2000, scoped, tag = 'input window, operand 2']
    #allocation8 [shape = 's32[2]{0}', space=sflag, size = 0x8, scoped, tag = 'scoped memory for tpu_custom_call.1']
    #allocation9 [shape = 'u8[8192]{0}', space=vmem, size = 0x2000, scoped, tag = 'output window, operand 0']
    %8 = vsyncpa [#allocation5], 0
    %9 = vsyncpa [#allocation3], 0
    %s10 = scalar_lea.sflag [#allocation3], 1
    %11 = vsyncpa %s10, 0
    %12 = vsyncpa [#allocation8], 0
    %s13 = scalar_lea.sflag [#allocation8], 1
    %14 = vsyncpa %s13, 0
    %15 = vsyncpa [#allocation4], 0
    %s16 = scalar_lea.sflag [#allocation4], 1
    %17 = vsyncpa %s16, 0
    loop: start=0, step=1, limit=4
    $region2: #{tpu_custom_call.1} parent=1 // loop_pre_header
      _
    $region3: #{tpu_custom_call.1} parent=1 // loop_header
      %s19 = sphi 0, %s23
      %p20 = scmp.ge.s32.totalorder %s19, 4
      %s26 = sphi 0, %s38
      %s27 = sphi 0, %s34
      %s28 = sphi 0, %s26
      %s29 = sphi 0, %s27
      %s30 = sphi 0, %s28
      %s31 = sphi 0, %s29
      %s39 = sphi 0, %s39
      %s41 = sphi 0, %s39
      %s42 = sphi 0, %s41
      %s56 = sphi 0, %s42
      %s70 = sphi 0, %s72
      %s73 = sphi 0, %s70
      %s74 = sphi 0, %s73
      %s90 = sphi 0, %s74
      %s98 = sphi 0, %s100
      %s101 = sphi 0, %s98
      %s102 = sphi 0, %s101
      %s118 = sphi 0, %s102
      %s126 = sphi 0, %s128
      %s129 = sphi 0, %s126
      %s130 = sphi 0, %s129
      %s146 = sphi 0, %s130
    $region4: #{tpu_custom_call.1} parent=1 // loop_header_branch
      %22 = sbr.rel (%p20) target = $region8
    $region5: #{tpu_custom_call.1} parent=1 // loop_body
      %s24 = ssub.s32 %s19, 1
      %s25 = ssub.s32 %s19, 2
      %s32 = sadd.s32 1, %s27
      %p33 = scmp.ge.s32.totalorder %s32, 1
      %s34 = scalar_select %p33, 0, %s32
      %s35 = sadd.s32 1, %s26
      %s36 = scalar_select %p33, %s35, %s26
      %p37 = scmp.ge.s32.totalorder %s36, 2
      %s38 = scalar_select %p37, 0, %s36
      %s40 = sadd.s32 %s39, 1
      %p43 = scmp.eq.s32.totalorder %s19, 1
      %p44 = scmp.ne.s32.totalorder %s39, %s41
      %p45 = scmp.eq.s32.totalorder %s19, 0
      %p46 = por %p44, %p45
      %p47 = scmp.ne.s32.totalorder %s39, %s41
      %p48 = scmp.eq.s32.totalorder %s24, 1
      %p49 = por %p47, %p48
      %p50 = scmp.ne.s32.totalorder %s41, %s42
      %p51 = scmp.eq.s32.totalorder %s24, 0
      %p52 = por %p50, %p51
      %p53 = scmp.ne.s32.totalorder %s41, %s42
      %p54 = scmp.eq.s32.totalorder %s25, 1
      %p55 = por %p53, %p54
      %p57 = scmp.ne.s32.totalorder %s42, %s56
      %p58 = scmp.eq.s32.totalorder %s25, 0
      %p59 = por %p57, %p58
      %s60 = ssub.s32 %s27, 1
      %p61 = scmp.gt.s32.totalorder %s60, 0
      %s62 = scalar_select %p61, %s60, 0
      %s63 = ssub.s32 %s34, 1
      %p64 = scmp.gt.s32.totalorder %s63, 0
      %s65 = scalar_select %p64, %s63, 0
      %s66 = ssub.s32 %s26, %s38
      %s67 = ssub.s32 %s62, %s65
      %s68 = sor.u32 %s66, %s67
      %p69 = scmp.eq.s32.totalorder %s68, 0
      %s71 = sadd.s32 %s70, 1
      %s72 = scalar_select %p69, %s70, %s71
      %p75 = pneg %p69
      %p76 = scmp.eq.s32.totalorder %s19, 1
      %p77 = por %p75, %p76
      %p78 = scmp.ne.s32.totalorder %s70, %s73
      %p79 = scmp.eq.s32.totalorder %s19, 0
      %p80 = por %p78, %p79
      %p81 = scmp.ne.s32.totalorder %s70, %s73
      %p82 = scmp.eq.s32.totalorder %s24, 1
      %p83 = por %p81, %p82
      %p84 = scmp.ne.s32.totalorder %s73, %s74
      %p85 = scmp.eq.s32.totalorder %s24, 0
      %p86 = por %p84, %p85
      %p87 = scmp.ne.s32.totalorder %s73, %s74
      %p88 = scmp.eq.s32.totalorder %s25, 1
      %p89 = por %p87, %p88
      %p91 = scmp.ne.s32.totalorder %s74, %s90
      %p92 = scmp.eq.s32.totalorder %s25, 0
      %p93 = por %p91, %p92
      %s94 = ssub.s32 %s26, %s38
      %s95 = ssub.s32 %s27, %s34
      %s96 = sor.u32 %s94, %s95
      %p97 = scmp.eq.s32.totalorder %s96, 0
      %s99 = sadd.s32 %s98, 1
      %s100 = scalar_select %p97, %s98, %s99
      %p103 = pneg %p97
      %p104 = scmp.eq.s32.totalorder %s19, 1
      %p105 = por %p103, %p104
      %p106 = scmp.ne.s32.totalorder %s98, %s101
      %p107 = scmp.eq.s32.totalorder %s19, 0
      %p108 = por %p106, %p107
      %p109 = scmp.ne.s32.totalorder %s98, %s101
      %p110 = scmp.eq.s32.totalorder %s24, 1
      %p111 = por %p109, %p110
      %p112 = scmp.ne.s32.totalorder %s101, %s102
      %p113 = scmp.eq.s32.totalorder %s24, 0
      %p114 = por %p112, %p113
      %p115 = scmp.ne.s32.totalorder %s101, %s102
      %p116 = scmp.eq.s32.totalorder %s25, 1
      %p117 = por %p115, %p116
      %p119 = scmp.ne.s32.totalorder %s102, %s118
      %p120 = scmp.eq.s32.totalorder %s25, 0
      %p121 = por %p119, %p120
      %s122 = ssub.s32 %s26, %s38
      %s123 = ssub.s32 %s27, %s34
      %s124 = sor.u32 %s122, %s123
      %p125 = scmp.eq.s32.totalorder %s124, 0
      %s127 = sadd.s32 %s126, 1
      %s128 = scalar_select %p125, %s126, %s127
      %p131 = pneg %p125
      %p132 = scmp.eq.s32.totalorder %s19, 1
      %p133 = por %p131, %p132
      %p134 = scmp.ne.s32.totalorder %s126, %s129
      %p135 = scmp.eq.s32.totalorder %s19, 0
      %p136 = por %p134, %p135
      %p137 = scmp.ne.s32.totalorder %s126, %s129
      %p138 = scmp.eq.s32.totalorder %s24, 1
      %p139 = por %p137, %p138
      %p140 = scmp.ne.s32.totalorder %s129, %s130
      %p141 = scmp.eq.s32.totalorder %s24, 0
      %p142 = por %p140, %p141
      %p143 = scmp.ne.s32.totalorder %s129, %s130
      %p144 = scmp.eq.s32.totalorder %s25, 1
      %p145 = por %p143, %p144
      %p147 = scmp.ne.s32.totalorder %s130, %s146
      %p148 = scmp.eq.s32.totalorder %s25, 0
      %p149 = por %p147, %p148
      %p150 = scmp.le.s32.totalorder 1, %s19
      %p151 = scmp.lt.s32.totalorder %s19, 3
      %p152 = pnand %p150, %p151
      %p153 = pneg %p152
      // Predicated region
      $region9: #{tpu_custom_call.1} parent=5 // pred_check
        _
      $region10: #{tpu_custom_call.1} parent=5 // pred_check_branch
        %155 = sbr.rel (%p152) target = $region12
      $region11: #{tpu_custom_call.1} parent=5 // pred_region
        %s156 = ssub.s32 %s19, 1
        // Predicated region
        $region13: #{tpu_custom_call.1} parent=11 // pred_check
          %p157 = pneg %p52
        $region14: #{tpu_custom_call.1} parent=11 // pred_check_branch
          %159 = sbr.rel (%p157) target = $region16
        $region15: #{tpu_custom_call.1} parent=11 // pred_region
          %161 = vsyncadd [#allocation5], 0
          %s163 = sshll.u32 %s0, 4
          %s164 = int_to_ptr.hbm [resolvable:$true] %s163
          %166 = dma.hbm_to_smem %s164, 16, [#allocation2], [#allocation5]
        $region16: #{tpu_custom_call.1} parent=11 // pred_fallthru
          _
      $region12: #{tpu_custom_call.1} parent=5 // pred_fallthru
        _
      %p167 = scmp.lt.s32.totalorder %s19, 2
      // Predicated region
      $region17: #{tpu_custom_call.1} parent=5 // pred_check
        %p168 = pneg %p167
      $region18: #{tpu_custom_call.1} parent=5 // pred_check_branch
        %170 = sbr.rel (%p168) target = $region20
      $region19: #{tpu_custom_call.1} parent=5 // pred_region
        // Predicated region
        $region21: #{tpu_custom_call.1} parent=19 // pred_check
          %p171 = pneg %p80
        $region22: #{tpu_custom_call.1} parent=19 // pred_check_branch
          %173 = sbr.rel (%p171) target = $region24
        $region23: #{tpu_custom_call.1} parent=19 // pred_region
          %s174 = sand.u32 %s70, 1
          %s175 = scalar_lea.sflag [#allocation3], %s174
          %s176 = sand.u32 %s70, 1
          %s177 = smul.addr %s176, 8
          %s178 = scalar_lea.vmem [#allocation6], %s177
          %s179 = ssub.s32 %s27, 1
          %p180 = scmp.gt.s32.totalorder %s179, 0
          %s181 = scalar_select %p180, %s179, 0
          %183 = vsyncadd %s175, 0
          %s184 = sadd.s32 %s181, %s26
          %s185 = smul.addr %s184, 8
          %s186 = scalar_lea.hbm %s1, %s185
          %s188 = sshll.u32 %s186, 4
          %s189 = int_to_ptr.hbm [resolvable:$true] %s188
          %s190 = sshll.u32 %s178, 4
          %s191 = int_to_ptr.vmem [resolvable:$true] %s190
          %193 = dma.hbm_to_vmem [thread:$0]  %s189, 128, %s191, %s175
        $region24: #{tpu_custom_call.1} parent=19 // pred_fallthru
          _
        // Predicated region
        $region25: #{tpu_custom_call.1} parent=19 // pred_check
          %p194 = pneg %p108
        $region26: #{tpu_custom_call.1} parent=19 // pred_check_branch
          %196 = sbr.rel (%p194) target = $region28
        $region27: #{tpu_custom_call.1} parent=19 // pred_region
          %s197 = sand.u32 %s98, 1
          %s198 = scalar_lea.sflag [#allocation8], %s197
          %s199 = sand.u32 %s98, 1
          %s200 = smul.addr %s199, 8
          %s201 = scalar_lea.vmem [#allocation7], %s200
          %203 = vsyncadd %s198, 0
          %s204 = sadd.s32 %s27, %s26
          %s205 = smul.addr %s204, 8
          %s206 = scalar_lea.hbm %s2, %s205
          %s208 = sshll.u32 %s206, 4
          %s209 = int_to_ptr.hbm [resolvable:$true] %s208
          %s210 = sshll.u32 %s201, 4
          %s211 = int_to_ptr.vmem [resolvable:$true] %s210
          %213 = dma.hbm_to_vmem [thread:$0]  %s209, 128, %s211, %s198
        $region28: #{tpu_custom_call.1} parent=19 // pred_fallthru
          _
      $region20: #{tpu_custom_call.1} parent=5 // pred_fallthru
        _
      %p214 = scmp.le.s32.totalorder 1, %s19
      %p215 = scmp.lt.s32.totalorder %s19, 3
      %p216 = pnand %p214, %p215
      %p217 = pneg %p216
      // Predicated region
      $region29: #{tpu_custom_call.1} parent=5 // pred_check
        _
      $region30: #{tpu_custom_call.1} parent=5 // pred_check_branch
        %219 = sbr.rel (%p216) target = $region32
      $region31: #{tpu_custom_call.1} parent=5 // pred_region
        %s220 = ssub.s32 %s19, 1
        // Predicated region
        $region33: #{tpu_custom_call.1} parent=31 // pred_check
          %p221 = pneg %p52
        $region34: #{tpu_custom_call.1} parent=31 // pred_check_branch
          %223 = sbr.rel (%p221) target = $region36
        $region35: #{tpu_custom_call.1} parent=31 // pred_region
          %225 = dma.done [#allocation5], 16
        $region36: #{tpu_custom_call.1} parent=31 // pred_fallthru
          _
        %s226 = sand.u32 %s73, 1
        %s227 = scalar_lea.sflag [#allocation3], %s226
        %s228 = sand.u32 %s73, 1
        %s229 = smul.addr %s228, 8
        %s230 = scalar_lea.vmem [#allocation6], %s229
        // Predicated region
        $region37: #{tpu_custom_call.1} parent=31 // pred_check
          %p231 = pneg %p86
        $region38: #{tpu_custom_call.1} parent=31 // pred_check_branch
          %233 = sbr.rel (%p231) target = $region40
        $region39: #{tpu_custom_call.1} parent=31 // pred_region
          %235 = dma.done %s227, 128
        $region40: #{tpu_custom_call.1} parent=31 // pred_fallthru
          _
        %s236 = sand.u32 %s101, 1
        %s237 = scalar_lea.sflag [#allocation8], %s236
        %s238 = sand.u32 %s101, 1
        %s239 = smul.addr %s238, 8
        %s240 = scalar_lea.vmem [#allocation7], %s239
        // Predicated region
        $region41: #{tpu_custom_call.1} parent=31 // pred_check
          %p241 = pneg %p114
        $region42: #{tpu_custom_call.1} parent=31 // pred_check_branch
          %243 = sbr.rel (%p241) target = $region44
        $region43: #{tpu_custom_call.1} parent=31 // pred_region
          %245 = dma.done %s237, 128
        $region44: #{tpu_custom_call.1} parent=31 // pred_fallthru
          _
        %246 = sfence
        %p247 = pneg %p52
        %p248 = pneg %p49
        %s249 = sand.u32 %s73, 1
        %s250 = scalar_lea.sflag [#allocation3], %s249
        %s251 = sand.u32 %s73, 1
        %s252 = smul.addr %s251, 8
        %s253 = scalar_lea.vmem [#allocation6], %s252
        %p254 = pneg %p86
        %p255 = pneg %p83
        %s256 = sand.u32 %s101, 1
        %s257 = scalar_lea.sflag [#allocation8], %s256
        %s258 = sand.u32 %s101, 1
        %s259 = smul.addr %s258, 8
        %s260 = scalar_lea.vmem [#allocation7], %s259
        %p261 = pneg %p114
        %p262 = pneg %p111
        %p263 = pneg %p142
        %p264 = pneg %p139
        %s265 = sand.u32 %s129, 1
        %s266 = scalar_lea.sflag [#allocation4], %s265
        %s267 = sand.u32 %s129, 1
        %s268 = smul.addr %s267, 8
        %s269 = scalar_lea.vmem [#allocation9], %s268
        %s270 = ssub.s32 %s29, 1
        %p271 = scmp.gt.s32.totalorder %s270, 0
        %s272 = scalar_select %p271, %s270, 0
        %s273 = sld [smem:[#allocation2]]
        %s274 = sld [smem:[#allocation2 + $0x1]]
        %s275 = sld [smem:[#allocation2 + $0x2]]
        %v276 = vld [vmem:[%s240] sm:$0xff]
        %v277 = vstv %s275
        %v278 = vmul.f32 %v277, %v276
        %vm279 = vcmask 261120
        %280 = vst.msk [vmem:[%s269] sm:$0xff] %vm279, %v278
        %v281 = vld [vmem:[%s269 + $0x1] sm:$0x7f]
        %v282 = vld [vmem:[%s240] sm:$0x7f]
        %v283 = vstv %s274
        %v284 = vmul.f32 %v283, %v282
        %v285 = vadd.f32 %v281, %v284
        %vm286 = vcmask 260096
        %287 = vst.msk [vmem:[%s269 + $0x1] sm:$0x7f] %vm286, %v285
        %v288 = vld [vmem:[%s269 + $0x2] sm:$0x3f]
        %v289 = vld [vmem:[%s240] sm:$0x3f]
        %v290 = vstv %s273
        %v291 = vmul.f32 %v290, %v289
        %v292 = vadd.f32 %v288, %v291
        %vm293 = vcmask 259072
        %294 = vst.msk [vmem:[%s269 + $0x2] sm:$0x3f] %vm293, %v292
        %p295 = scmp.eq.s32.totalorder %s29, 0
        %v296 = vld [vmem:[%s240] sm:$0x1]
        %v297 = vperm.slane %v296, 0
        %v298 = vld [vmem:[%s230 + $0x6] sm:$0x3]
        %s299 = scalar_select %p295, 1, 0
        %v300 = vstv %s299
        %vm301 = vcmp.eq.s32.totalorder %v300, 1
        %v302 = vsel %vm301, %v297, %v298
        %v303 = vld [vmem:[%s269] sm:$0x1]
        %v304 = vmul.f32 %v283, %v302
        %v306 = vrot.slane %v304, 1
        %v308 = vadd.f32 %v303, %v306
        %vm309 = vcmask 253952
        %310 = vst.msk [vmem:[%s269] sm:$0x1] %vm309, %v308
        %v311 = vld [vmem:[%s269] sm:$0x3]
        %v312 = vmul.f32 %v290, %v302
        %v313 = vadd.f32 %v311, %v312
        %vm314 = vcmask 254976
        %315 = vst.msk [vmem:[%s269] sm:$0x3] %vm314, %v313
        %s316 = sand.u32 %s129, 1
        %s317 = scalar_lea.sflag [#allocation4], %s316
        %s318 = sand.u32 %s129, 1
        %s319 = smul.addr %s318, 8
        %s320 = scalar_lea.vmem [#allocation9], %s319
        // Predicated region
        $region45: #{tpu_custom_call.1} parent=31 // pred_check
          %p321 = pneg %p139
        $region46: #{tpu_custom_call.1} parent=31 // pred_check_branch
          %323 = sbr.rel (%p321) target = $region48
        $region47: #{tpu_custom_call.1} parent=31 // pred_region
          %325 = vsyncadd %s317, 0
          %s326 = sadd.s32 %s29, %s28
          %s327 = smul.addr %s326, 8
          %s328 = scalar_lea.hbm %s3, %s327
          %s330 = sshll.u32 %s320, 4
          %s331 = int_to_ptr.vmem [resolvable:$true] %s330
          %s332 = sshll.u32 %s328, 4
          %s333 = int_to_ptr.hbm [resolvable:$true] %s332
          %335 = dma.vmem_to_hbm [thread:$0]  %s331, 128, %s333, %s317
        $region48: #{tpu_custom_call.1} parent=31 // pred_fallthru
          _
      $region32: #{tpu_custom_call.1} parent=5 // pred_fallthru
        _
      %p336 = scmp.le.s32.totalorder 2, %s19
      // Predicated region
      $region49: #{tpu_custom_call.1} parent=5 // pred_check
        %p337 = pneg %p336
      $region50: #{tpu_custom_call.1} parent=5 // pred_check_branch
        %339 = sbr.rel (%p337) target = $region52
      $region51: #{tpu_custom_call.1} parent=5 // pred_region
        %s340 = ssub.s32 %s19, 2
        // Predicated region
        $region53: #{tpu_custom_call.1} parent=51 // pred_check
          %p341 = pneg %p145
        $region54: #{tpu_custom_call.1} parent=51 // pred_check_branch
          %343 = sbr.rel (%p341) target = $region56
        $region55: #{tpu_custom_call.1} parent=51 // pred_region
          %s344 = sand.u32 %s130, 1
          %s345 = scalar_lea.sflag [#allocation4], %s344
          %s346 = sand.u32 %s130, 1
          %s347 = smul.addr %s346, 8
          %s348 = scalar_lea.vmem [#allocation9], %s347
          %350 = dma.done %s345, 128
        $region56: #{tpu_custom_call.1} parent=51 // pred_fallthru
          _
      $region52: #{tpu_custom_call.1} parent=5 // pred_fallthru
        _
    $region6: #{tpu_custom_call.1} parent=1 // loop_footer
      %s23 = sadd.s32 1, %s19
    $region7: #{tpu_custom_call.1} parent=1 // loop_footer_branch
      %18 = sbr.rel target = $region3
    $region8: #{tpu_custom_call.1} parent=1 // loop_exit
      _
    %351 = vsyncpa [#allocation3], 1
    %s352 = scalar_lea.sflag [#allocation3], 1
    %353 = vsyncpa %s352, 1
    %354 = vsyncpa [#allocation8], 1
    %s355 = scalar_lea.sflag [#allocation8], 1
    %356 = vsyncpa %s355, 1
    %357 = vsyncpa [#allocation4], 1
    %s358 = scalar_lea.sflag [#allocation4], 1
    %359 = vsyncpa %s358, 1
    %360 = vsyncpa [#allocation5], 1
    %s361 = scalar_lea.sflag [#allocation5], 1
    %362 = vsyncpa %s361, 1

</llo_original>
